<compile_context>
chip_gen: v7x
topology: tpu7x:2x2x1
jax: 0.10.0
libtpu: 0.0.40
codegen_flags: <defaults>
</compile_context>

<pallas_src>
import functools

import numpy as np
import jax
import jax.numpy as jnp
from jax.experimental import pallas as pl
from jax.experimental.pallas import tpu as pltpu


def _round_up(v, m):
    return ((v + m - 1) // m) * m


# ---------------------------------------------------------------------------
# Lane-padded DFT matrices (deterministic "parameters" of the kernel)
# ---------------------------------------------------------------------------
def build_dft_matrices(K, tau_max):
    """Return (C, Dr, Di, F_pad, L_pad), float32.

    x @ C             = [Xr | Xi]        rfft (K -> F = K//2+1), lane-padded
    Gr @ Dr + Gi @ Di = truncated irfft restricted to the 2*tau_max+1 lags
                        (order: 0..tau_max, then K-tau_max..K-1), lane-padded.
    Zero padding columns / rows contribute exactly zero.
    """
    F = K // 2 + 1
    L = 2 * tau_max + 1
    F_pad = _round_up(F, 128)
    L_pad = _round_up(L, 128)

    k = np.arange(K)[:, None].astype(np.float64)
    f = np.arange(F)[None, :].astype(np.float64)
    ang = 2.0 * np.pi * k * f / K
    Cr = np.cos(ang)                       # (K, F)
    Ci = -np.sin(ang)                      # (K, F)

    # Selected output time indices: [0..tau_max] ++ [K-tau_max..K-1]
    # (matches the reference's 0:tau_max+1 / -tau_max: slicing, including the
    #  duplicated K/2 sample when tau_max == K//2 for even K).
    t_sel = np.concatenate([np.arange(tau_max + 1), np.arange(K - tau_max, K)])
    ff = np.arange(F)[:, None].astype(np.float64)
    tt = t_sel[None, :].astype(np.float64)
    ang2 = 2.0 * np.pi * ff * tt / K

    w = np.full((F, 1), 2.0)
    w[0, 0] = 1.0
    if K % 2 == 0:
        w[-1, 0] = 1.0                     # Nyquist bin not doubled
    Dr = (w * np.cos(ang2)) / K            # (F, L)
    Di = (-w * np.sin(ang2)) / K           # (F, L)
    Di[0, :] = 0.0                         # irfft ignores imag of DC / Nyquist
    if K % 2 == 0:
        Di[-1, :] = 0.0

    C = np.zeros((K, 2 * F_pad), np.float32)
    C[:, :F] = Cr
    C[:, F_pad:F_pad + F] = Ci
    Dr_p = np.zeros((F_pad, L_pad), np.float32)
    Di_p = np.zeros((F_pad, L_pad), np.float32)
    Dr_p[:F, :L] = Dr
    Di_p[:F, :L] = Di
    return C, Dr_p, Di_p, F_pad, L_pad


# ---------------------------------------------------------------------------
# Pallas kernel: Bt batch elements per grid step, all N*N pairs at once
# ---------------------------------------------------------------------------
def _gcc_kernel(x_ref, c_ref, dr_ref, di_ref, out_ref, *, N, Bt, F_pad,
                transform, matmul_dtype):
    # x_ref  : (Bt*N, K)   f32
    # c_ref  : (K, 2*F_pad)        matmul_dtype
    # dr_ref : (F_pad, L_pad)      matmul_dtype
    # di_ref : (F_pad, L_pad)      matmul_dtype
    # out_ref: (Bt*N*N, L_pad)     f32
    needs_cast = jnp.dtype(matmul_dtype) != jnp.dtype(jnp.float32)

    x = x_ref[...]
    if needs_cast:
        x = x.astype(matmul_dtype)         # free VPU cast, saves an XLA pass

    # rfft: one fused real/imag matmul (f32 accumulation).
    xri = jnp.dot(x, c_ref[...], preferred_element_type=jnp.float32)
    xr = xri[:, :F_pad]                    # (Bt*N, F_pad), 128-aligned slices
    xi = xri[:, F_pad:]

    if transform == 'PHAT':
        # Reference regularisation: 1/(sqrt(p) + 1e-12).  One divide (EUP) +
        # two multiplies.  Padded zero bins stay exactly zero (0 * 1e12 = 0).
        mod = jnp.sqrt(xr * xr + xi * xi) + 1e-12
        inv = 1.0 / mod
        xr = xr * inv
        xi = xi * inv

    # Cross-spectrum for ALL (n, m) pairs of every batch element in the block:
    #   G[b, n, m] = X[b, n] * conj(X[b, m])
    rows = Bt * N * N
    xn_r = jnp.broadcast_to(xr[:, None, :], (Bt * N, N, F_pad)).reshape(rows, F_pad)
    xn_i = jnp.broadcast_to(xi[:, None, :], (Bt * N, N, F_pad)).reshape(rows, F_pad)
    xm_r = jnp.broadcast_to(xr.reshape(Bt, 1, N, F_pad),
                            (Bt, N, N, F_pad)).reshape(rows, F_pad)
    xm_i = jnp.broadcast_to(xi.reshape(Bt, 1, N, F_pad),
                            (Bt, N, N, F_pad)).reshape(rows, F_pad)

    gr = xn_r * xm_r + xn_i * xm_i         # (Bt*N*N, F_pad) f32
    gi = xn_i * xm_r - xn_r * xm_i
    if needs_cast:
        gr = gr.astype(matmul_dtype)
        gi = gi.astype(matmul_dtype)

    # Truncated irfft of all pairs: two lane-aligned matmuls, one dense store.
    # (No concatenated [gr|gi] copy.)
    y = (jnp.dot(gr, dr_ref[...], preferred_element_type=jnp.float32)
         + jnp.dot(gi, di_ref[...], preferred_element_type=jnp.float32))
    out_ref[...] = y.astype(out_ref.dtype)


# ---------------------------------------------------------------------------
# VMEM budgeting / block-batch selection
# ---------------------------------------------------------------------------
def _vmem_capacity_bytes():
    try:
        info = pltpu.get_tpu_info()
        for name in ("vmem_capacity_bytes", "vmem_bytes", "vmem_size_bytes"):
            cap = getattr(info, name, None)
            if cap:
                return int(cap)
    except Exception:
        pass
    return 64 * 2 ** 20                    # conservative (v7x per-core)


def _kernel_vmem_bytes(bt, N, K, F_pad, L_pad, mm_itemsize):
    """Conservative (over-counting) per-step VMEM footprint, incl. constants."""
    rows_x = bt * N
    rows_p = bt * N * N
    x_blk = rows_x * K * 4
    o_blk = rows_p * L_pad * 4
    const = (K * 2 * F_pad + 2 * F_pad * L_pad) * mm_itemsize   # single-buffered
    interm = (rows_x * K * mm_itemsize             # in-kernel x cast (bf16 path)
              + rows_x * 2 * F_pad * 4             # xri
              + 2 * rows_x * F_pad * 4             # xr, xi (PHAT-scaled)
              + 4 * rows_p * F_pad * 4             # pair-expanded operands
              + 2 * rows_p * F_pad * 4             # gr, gi (f32)
              + 2 * rows_p * F_pad * mm_itemsize   # gr/gi casts (bf16 path)
              + rows_p * L_pad * 4)                # y
    return 2 * (x_blk + o_blk) + const + interm    # x / out double-buffered


def _choose_block_batch(B, N, K, F_pad, L_pad, mm_itemsize, budget_bytes):
    """Largest Bt that (a) divides B, (b) keeps blocks sublane-aligned
    (Bt*N % 8 == 0 unless the block spans the full batch), (c) fits the VMEM
    budget, preferring >= 4 (then >= 2) grid steps for megacore + pipelining."""
    def aligned(bt):
        return B % bt == 0 and (bt == B or (bt * N) % 8 == 0)

    valid = [bt for bt in range(1, B + 1)
             if aligned(bt)
             and _kernel_vmem_bytes(bt, N, K, F_pad, L_pad, mm_itemsize)
                 <= budget_bytes]
    if valid:
        for min_steps in (4, 2, 1):
            cand = [bt for bt in valid if B // bt >= min_steps]
            if cand:
                return max(cand)
    # Nothing fits the budget: smallest aligned block (least VMEM).
    # TODO(synk): additionally tile the N*N pair rows / frequency axis over
    #             extra grid axes instead of giving up here.
    return min(bt for bt in range(1, B + 1) if aligned(bt))


# ---------------------------------------------------------------------------
# Wrapper
# ---------------------------------------------------------------------------
def gcc_pallas(x, N, K, tau_max=None, transform=None,
               matmul_dtype=jnp.float32, return_padded=False):
    """GCC of x: (B, N, K) -> (B, N, N, 2*tau_max+1), float32.

    matmul_dtype=jnp.bfloat16 uses bf16 MXU inputs (f32 accumulation, f32
    elementwise math) -- recommended on v5e (f32 MXU is emulated there) and a
    good default on v6e/v7x; keep f32 for tightest accuracy.
    return_padded=True returns the lane-padded (B, N, N, L_pad) layout and
    skips the post-kernel un-pad copy (valid data in [..., :2*tau_max+1]).
    """
    assert transform is None or transform == 'PHAT'
    tau_max = tau_max if tau_max is not None else K // 2
    assert tau_max <= K // 2

    B = x.shape[0]
    assert x.shape == (B, N, K)
    L = 2 * tau_max + 1

    C_np, Dr_np, Di_np, F_pad, L_pad = build_dft_matrices(K, tau_max)
    C = jnp.asarray(C_np, dtype=matmul_dtype)
    Dr = jnp.asarray(Dr_np, dtype=matmul_dtype)
    Di = jnp.asarray(Di_np, dtype=matmul_dtype)

    itemsize = jnp.dtype(matmul_dtype).itemsize
    cap = _vmem_capacity_bytes()
    budget = int(cap * 0.65)
    Bt = _choose_block_batch(B, N, K, F_pad, L_pad, itemsize, budget)
    grid = (B // Bt,)

    need = _kernel_vmem_bytes(Bt, N, K, F_pad, L_pad, itemsize)
    vmem_limit = int(min(int(cap * 0.85),
                         max(32 * 2 ** 20, need + (8 << 20))))

    # Lane-dense 2-D views; x stays f32 in HBM (cast happens inside the kernel).
    x2 = x.reshape(B * N, K).astype(jnp.float32)

    kernel = functools.partial(_gcc_kernel, N=N, Bt=Bt, F_pad=F_pad,
                               transform=transform, matmul_dtype=matmul_dtype)

    def _build(single_buffer_consts):
        const_kw = ({"pipeline_mode": pl.Buffered(1)}
                    if single_buffer_consts else {})
        in_specs = [
            pl.BlockSpec((Bt * N, K), lambda b: (b, 0)),
            # Grid-invariant DFT matrices (constant index_map -> fetched once).
            pl.BlockSpec((K, 2 * F_pad), lambda b: (0, 0), **const_kw),
            pl.BlockSpec((F_pad, L_pad), lambda b: (0, 0), **const_kw),
            pl.BlockSpec((F_pad, L_pad), lambda b: (0, 0), **const_kw),
        ]
        return pl.pallas_call(
            kernel,
            out_shape=jax.ShapeDtypeStruct((B * N * N, L_pad), jnp.float32),
            grid_spec=pltpu.PrefetchScalarGridSpec(
                num_scalar_prefetch=0,
                grid=grid,
                in_specs=in_specs,
                out_specs=pl.BlockSpec((Bt * N * N, L_pad), lambda b: (b, 0)),
            ),
            compiler_params=pltpu.CompilerParams(
                dimension_semantics=("parallel",),
                vmem_limit_bytes=vmem_limit,
            ),
        )

    try:
        out = _build(True)(x2, C, Dr, Di)
    except Exception:
        # Older JAX without BlockSpec(pipeline_mode=...) / Buffered(1):
        # identical kernel with default double-buffered constants.
        out = _build(False)(x2, C, Dr, Di)

    out = out.reshape(B, N, N, L_pad)
    if return_padded:
        return out
    # TODO(synk): fuse this un-pad slice into the consumer (it is a full extra
    #             HBM pass over the padded output).
    return out[..., :L]


# ---------------------------------------------------------------------------
# Pure-JAX reference (mirrors the PyTorch forward)
# ---------------------------------------------------------------------------
def gcc_reference(x, N, K, tau_max=None, transform=None):
    tau_max = tau_max if tau_max is not None else K // 2
    Xc = jnp.fft.rfft(x)                                      # (B, N, F) complex
    Xr, Xi = jnp.real(Xc), jnp.imag(Xc)
    if transform == 'PHAT':
        mod = jnp.sqrt(Xr * Xr + Xi * Xi) + 1e-12
        Xr = Xr / mod
        Xi = Xi / mod
    Xc = Xr + 1j * Xi
    G = Xc[..., :, None, :] * jnp.conj(Xc[..., None, :, :])   # (B, N, N, F)
    g = jnp.fft.irfft(G, n=K)                                 # (B, N, N, K)
    out = jnp.concatenate([g[..., :tau_max + 1], g[..., K - tau_max:]], axis=-1)
    return out.astype(jnp.float32)


if __name__ == "__main__":
    B, N, K = 2, 4, 16          # batch, number of signals, window length
    key = jax.random.PRNGKey(0)
    x = jax.random.normal(key, (B, N, K), dtype=jnp.float32)

    # f32 MXU path: tight tolerance vs. the FFT reference.
    for transform in (None, 'PHAT'):
        out = jax.block_until_ready(
            gcc_pallas(x, N=N, K=K, tau_max=None, transform=transform))
        ref = np.asarray(gcc_reference(x, N=N, K=K, tau_max=None,
                                       transform=transform))
        assert out.shape == (B, N, N, 2 * (K // 2) + 1)
        np.testing.assert_allclose(np.asarray(out), ref, rtol=2e-3, atol=2e-3)

    # bf16 matmul-input path: f32 accumulation / elementwise; loose tolerance.
    for transform in (None, 'PHAT'):
        out = jax.block_until_ready(
            gcc_pallas(x, N=N, K=K, tau_max=None, transform=transform,
                       matmul_dtype=jnp.bfloat16))
        ref = np.asarray(gcc_reference(x, N=N, K=K, tau_max=None,
                                       transform=transform))
        scale = max(float(np.max(np.abs(ref))), 1.0)
        np.testing.assert_allclose(np.asarray(out), ref,
                                   rtol=1e-1, atol=1e-1 * scale)

    print("KERNEL_OK")
</pallas_src>

<mosaic_0001>
module attributes {stable_mosaic.version = 11 : i64} {
  func.func @_gcc_kernel(%arg0: i32, %arg1: memref<8x16xf32, #tpu.memory_space<vmem>>, %arg2: memref<16x256xf32, #tpu.memory_space<vmem>>, %arg3: memref<128x128xf32, #tpu.memory_space<vmem>>, %arg4: memref<128x128xf32, #tpu.memory_space<vmem>>, %arg5: memref<32x128xf32, #tpu.memory_space<vmem>>) attributes {dimension_semantics = [#tpu.dimension_semantics<parallel>], iteration_bounds = array<i64: 1>, scalar_prefetch = 0 : i64, scratch_operands = 0 : i64, tpu.core_type = #tpu.core_type<tc>, window_params = [{transform_indices = @transform_0, window_bounds = array<i64: 8, 16>}, {pipeline_mode = #tpu.pipeline_mode<synchronous>, transform_indices = @transform_1, window_bounds = array<i64: 16, 256>}, {pipeline_mode = #tpu.pipeline_mode<synchronous>, transform_indices = @transform_2, window_bounds = array<i64: 128, 128>}, {pipeline_mode = #tpu.pipeline_mode<synchronous>, transform_indices = @transform_3, window_bounds = array<i64: 128, 128>}, {transform_indices = @transform_4, window_bounds = array<i64: 32, 128>}]} {
    %c0 = arith.constant 0 : index
    %c0_0 = arith.constant 0 : index
    %0 = vector.load %arg1[%c0, %c0_0] : memref<8x16xf32, #tpu.memory_space<vmem>>, vector<8x16xf32>
    %c0_1 = arith.constant 0 : index
    %c0_2 = arith.constant 0 : index
    %1 = vector.load %arg2[%c0_1, %c0_2] : memref<16x256xf32, #tpu.memory_space<vmem>>, vector<16x256xf32>
    %cst = arith.constant dense<0.000000e+00> : vector<8x256xf32>
    %2 = tpu.matmul %0, %1, %cst {dimension_numbers = #tpu.dot_dimension_numbers<[1], [0], [0], [1], [0, 0, 1, 1], [], []>} : vector<8x16xf32>, vector<16x256xf32>, vector<8x256xf32> -> vector<8x256xf32>
    %3 = vector.extract_strided_slice %2 {offsets = [0, 0], sizes = [8, 128], strides = [1, 1]} : vector<8x256xf32> to vector<8x128xf32>
    %4 = vector.extract_strided_slice %2 {offsets = [0, 128], sizes = [8, 128], strides = [1, 1]} : vector<8x256xf32> to vector<8x128xf32>
    %5 = vector.shape_cast %3 : vector<8x128xf32> to vector<8x1x128xf32>
    %6 = vector.shape_cast %5 : vector<8x1x128xf32> to vector<8x1x128xf32>
    %7 = vector.broadcast %6 : vector<8x1x128xf32> to vector<8x4x128xf32>
    %8 = vector.shape_cast %7 : vector<8x4x128xf32> to vector<32x128xf32>
    %9 = vector.shape_cast %4 : vector<8x128xf32> to vector<8x1x128xf32>
    %10 = vector.shape_cast %9 : vector<8x1x128xf32> to vector<8x1x128xf32>
    %11 = vector.broadcast %10 : vector<8x1x128xf32> to vector<8x4x128xf32>
    %12 = vector.shape_cast %11 : vector<8x4x128xf32> to vector<32x128xf32>
    %13 = vector.shape_cast %3 : vector<8x128xf32> to vector<2x1x4x128xf32>
    %14 = vector.shape_cast %13 : vector<2x1x4x128xf32> to vector<2x1x4x128xf32>
    %15 = vector.broadcast %14 : vector<2x1x4x128xf32> to vector<2x4x4x128xf32>
    %16 = vector.shape_cast %15 : vector<2x4x4x128xf32> to vector<32x128xf32>
    %17 = vector.shape_cast %4 : vector<8x128xf32> to vector<2x1x4x128xf32>
    %18 = vector.shape_cast %17 : vector<2x1x4x128xf32> to vector<2x1x4x128xf32>
    %19 = vector.broadcast %18 : vector<2x1x4x128xf32> to vector<2x4x4x128xf32>
    %20 = vector.shape_cast %19 : vector<2x4x4x128xf32> to vector<32x128xf32>
    %21 = arith.mulf %8, %16 : vector<32x128xf32>
    %22 = arith.mulf %12, %20 : vector<32x128xf32>
    %23 = arith.addf %21, %22 : vector<32x128xf32>
    %24 = arith.mulf %12, %16 : vector<32x128xf32>
    %25 = arith.mulf %8, %20 : vector<32x128xf32>
    %26 = arith.subf %24, %25 : vector<32x128xf32>
    %c0_3 = arith.constant 0 : index
    %c0_4 = arith.constant 0 : index
    %27 = vector.load %arg3[%c0_3, %c0_4] : memref<128x128xf32, #tpu.memory_space<vmem>>, vector<128x128xf32>
    %cst_5 = arith.constant dense<0.000000e+00> : vector<32x128xf32>
    %28 = tpu.matmul %23, %27, %cst_5 {dimension_numbers = #tpu.dot_dimension_numbers<[1], [0], [0], [1], [0, 0, 1, 1], [], []>} : vector<32x128xf32>, vector<128x128xf32>, vector<32x128xf32> -> vector<32x128xf32>
    %c0_6 = arith.constant 0 : index
    %c0_7 = arith.constant 0 : index
    %29 = vector.load %arg4[%c0_6, %c0_7] : memref<128x128xf32, #tpu.memory_space<vmem>>, vector<128x128xf32>
    %cst_8 = arith.constant dense<0.000000e+00> : vector<32x128xf32>
    %30 = tpu.matmul %26, %29, %cst_8 {dimension_numbers = #tpu.dot_dimension_numbers<[1], [0], [0], [1], [0, 0, 1, 1], [], []>} : vector<32x128xf32>, vector<128x128xf32>, vector<32x128xf32> -> vector<32x128xf32>
    %31 = arith.addf %28, %30 : vector<32x128xf32>
    %c0_9 = arith.constant 0 : index
    %c0_10 = arith.constant 0 : index
    %32 = vector.load %arg5[%c0_9, %c0_10] : memref<32x128xf32, #tpu.memory_space<vmem>>, vector<32x128xf32>
    tpu.vector_store %arg5[%c0_9, %c0_10], %31 {strides = array<i32>} : memref<32x128xf32, #tpu.memory_space<vmem>>, vector<32x128xf32>,
    return
  }
  func.func @transform_0(%arg0: i32) -> (i32, i32) {
    %c0_i32 = arith.constant 0 : i32
    %c0_i32_0 = arith.constant 0 : i32
    return %arg0, %c0_i32 : i32, i32
  }
  func.func @transform_1(%arg0: i32) -> (i32, i32) {
    %c0_i32 = arith.constant 0 : i32
    %c0_i32_0 = arith.constant 0 : i32
    %c0_i32_1 = arith.constant 0 : i32
    return %c0_i32, %c0_i32_0 : i32, i32
  }
  func.func @transform_2(%arg0: i32) -> (i32, i32) {
    %c0_i32 = arith.constant 0 : i32
    %c0_i32_0 = arith.constant 0 : i32
    %c0_i32_1 = arith.constant 0 : i32
    return %c0_i32, %c0_i32_0 : i32, i32
  }
  func.func @transform_3(%arg0: i32) -> (i32, i32) {
    %c0_i32 = arith.constant 0 : i32
    %c0_i32_0 = arith.constant 0 : i32
    %c0_i32_1 = arith.constant 0 : i32
    return %c0_i32, %c0_i32_0 : i32, i32
  }
  func.func @transform_4(%arg0: i32) -> (i32, i32) {
    %c0_i32 = arith.constant 0 : i32
    %c0_i32_0 = arith.constant 0 : i32
    return %arg0, %c0_i32 : i32, i32
  }
}

module attributes {stable_mosaic.version = 11 : i64} {
  func.func @_gcc_kernel(%arg0: i32, %arg1: memref<8x16xf32, #tpu.memory_space<vmem>>, %arg2: memref<16x256xf32, #tpu.memory_space<vmem>>, %arg3: memref<128x128xf32, #tpu.memory_space<vmem>>, %arg4: memref<128x128xf32, #tpu.memory_space<vmem>>, %arg5: memref<32x128xf32, #tpu.memory_space<vmem>>) attributes {dimension_semantics = [#tpu.dimension_semantics<parallel>], iteration_bounds = array<i64: 1>, scalar_prefetch = 0 : i64, scratch_operands = 0 : i64, tpu.core_type = #tpu.core_type<tc>, window_params = [{transform_indices = @transform_0, window_bounds = array<i64: 8, 16>}, {pipeline_mode = #tpu.pipeline_mode<synchronous>, transform_indices = @transform_1, window_bounds = array<i64: 16, 256>}, {pipeline_mode = #tpu.pipeline_mode<synchronous>, transform_indices = @transform_2, window_bounds = array<i64: 128, 128>}, {pipeline_mode = #tpu.pipeline_mode<synchronous>, transform_indices = @transform_3, window_bounds = array<i64: 128, 128>}, {transform_indices = @transform_4, window_bounds = array<i64: 32, 128>}]} {
    %c0 = arith.constant 0 : index
    %c0_0 = arith.constant 0 : index
    %0 = vector.load %arg1[%c0, %c0_0] : memref<8x16xf32, #tpu.memory_space<vmem>>, vector<8x16xf32>
    %c0_1 = arith.constant 0 : index
    %c0_2 = arith.constant 0 : index
    %1 = vector.load %arg2[%c0_1, %c0_2] : memref<16x256xf32, #tpu.memory_space<vmem>>, vector<16x256xf32>
    %cst = arith.constant dense<0.000000e+00> : vector<8x256xf32>
    %2 = tpu.matmul %0, %1, %cst {dimension_numbers = #tpu.dot_dimension_numbers<[1], [0], [0], [1], [0, 0, 1, 1], [], []>} : vector<8x16xf32>, vector<16x256xf32>, vector<8x256xf32> -> vector<8x256xf32>
    %3 = vector.extract_strided_slice %2 {offsets = [0, 0], sizes = [8, 128], strides = [1, 1]} : vector<8x256xf32> to vector<8x128xf32>
    %4 = vector.extract_strided_slice %2 {offsets = [0, 128], sizes = [8, 128], strides = [1, 1]} : vector<8x256xf32> to vector<8x128xf32>
    %5 = vector.shape_cast %3 : vector<8x128xf32> to vector<8x1x128xf32>
    %6 = vector.shape_cast %5 : vector<8x1x128xf32> to vector<8x1x128xf32>
    %7 = vector.broadcast %6 : vector<8x1x128xf32> to vector<8x4x128xf32>
    %8 = vector.shape_cast %7 : vector<8x4x128xf32> to vector<32x128xf32>
    %9 = vector.shape_cast %4 : vector<8x128xf32> to vector<8x1x128xf32>
    %10 = vector.shape_cast %9 : vector<8x1x128xf32> to vector<8x1x128xf32>
    %11 = vector.broadcast %10 : vector<8x1x128xf32> to vector<8x4x128xf32>
    %12 = vector.shape_cast %11 : vector<8x4x128xf32> to vector<32x128xf32>
    %13 = vector.shape_cast %3 : vector<8x128xf32> to vector<2x1x4x128xf32>
    %14 = vector.shape_cast %13 : vector<2x1x4x128xf32> to vector<2x1x4x128xf32>
    %15 = vector.broadcast %14 : vector<2x1x4x128xf32> to vector<2x4x4x128xf32>
    %16 = vector.shape_cast %15 : vector<2x4x4x128xf32> to vector<32x128xf32>
    %17 = vector.shape_cast %4 : vector<8x128xf32> to vector<2x1x4x128xf32>
    %18 = vector.shape_cast %17 : vector<2x1x4x128xf32> to vector<2x1x4x128xf32>
    %19 = vector.broadcast %18 : vector<2x1x4x128xf32> to vector<2x4x4x128xf32>
    %20 = vector.shape_cast %19 : vector<2x4x4x128xf32> to vector<32x128xf32>
    %21 = arith.mulf %8, %16 : vector<32x128xf32>
    %22 = arith.mulf %12, %20 : vector<32x128xf32>
    %23 = arith.addf %21, %22 : vector<32x128xf32>
    %24 = arith.mulf %12, %16 : vector<32x128xf32>
    %25 = arith.mulf %8, %20 : vector<32x128xf32>
    %26 = arith.subf %24, %25 : vector<32x128xf32>
    %c0_3 = arith.constant 0 : index
    %c0_4 = arith.constant 0 : index
    %27 = vector.load %arg3[%c0_3, %c0_4] : memref<128x128xf32, #tpu.memory_space<vmem>>, vector<128x128xf32>
    %cst_5 = arith.constant dense<0.000000e+00> : vector<32x128xf32>
    %28 = tpu.matmul %23, %27, %cst_5 {dimension_numbers = #tpu.dot_dimension_numbers<[1], [0], [0], [1], [0, 0, 1, 1], [], []>} : vector<32x128xf32>, vector<128x128xf32>, vector<32x128xf32> -> vector<32x128xf32>
    %c0_6 = arith.constant 0 : index
    %c0_7 = arith.constant 0 : index
    %29 = vector.load %arg4[%c0_6, %c0_7] : memref<128x128xf32, #tpu.memory_space<vmem>>, vector<128x128xf32>
    %cst_8 = arith.constant dense<0.000000e+00> : vector<32x128xf32>
    %30 = tpu.matmul %26, %29, %cst_8 {dimension_numbers = #tpu.dot_dimension_numbers<[1], [0], [0], [1], [0, 0, 1, 1], [], []>} : vector<32x128xf32>, vector<128x128xf32>, vector<32x128xf32> -> vector<32x128xf32>
    %31 = arith.addf %28, %30 : vector<32x128xf32>
    %c0_9 = arith.constant 0 : index
    %c0_10 = arith.constant 0 : index
    %32 = vector.load %arg5[%c0_9, %c0_10] : memref<32x128xf32, #tpu.memory_space<vmem>>, vector<32x128xf32>
    tpu.vector_store %arg5[%c0_9, %c0_10], %31 {strides = array<i32>} : memref<32x128xf32, #tpu.memory_space<vmem>>, vector<32x128xf32>,
    return
  }
  func.func @transform_0(%arg0: i32) -> (i32, i32) {
    %c0_i32 = arith.constant 0 : i32
    %c0_i32_0 = arith.constant 0 : i32
    return %arg0, %c0_i32 : i32, i32
  }
  func.func @transform_1(%arg0: i32) -> (i32, i32) {
    %c0_i32 = arith.constant 0 : i32
    %c0_i32_0 = arith.constant 0 : i32
    %c0_i32_1 = arith.constant 0 : i32
    return %c0_i32, %c0_i32_0 : i32, i32
  }
  func.func @transform_2(%arg0: i32) -> (i32, i32) {
    %c0_i32 = arith.constant 0 : i32
    %c0_i32_0 = arith.constant 0 : i32
    %c0_i32_1 = arith.constant 0 : i32
    return %c0_i32, %c0_i32_0 : i32, i32
  }
  func.func @transform_3(%arg0: i32) -> (i32, i32) {
    %c0_i32 = arith.constant 0 : i32
    %c0_i32_0 = arith.constant 0 : i32
    %c0_i32_1 = arith.constant 0 : i32
    return %c0_i32, %c0_i32_0 : i32, i32
  }
  func.func @transform_4(%arg0: i32) -> (i32, i32) {
    %c0_i32 = arith.constant 0 : i32
    %c0_i32_0 = arith.constant 0 : i32
    return %arg0, %c0_i32 : i32, i32
  }
}

</mosaic_0001>

<llo_original>
// kernel: tpu_custom_call.1
$region0: #{tpu_custom_call.1}
  #allocation0 [shape = 'u32[]', space=smem, size = 0x4, offset = 0x4, fixed_abs, tag = 'smem constant byte address 0x4 - core index']
  #allocation1 [shape = 'u32[144,128]{1,0:T(1,128)}', space=vmem, size = 0x12000, scoped, tag = 'internal scratch']
  %s0 = inlined_call_operand.hbm [shape: f32[8,16], index: 0, kind: input, shape index: {}]
  %s1 = inlined_call_operand.hbm [shape: f32[16,256], index: 1, kind: input, shape index: {}]
  %s2 = inlined_call_operand.hbm [shape: f32[128,128], index: 2, kind: input, shape index: {}]
  %s3 = inlined_call_operand.hbm [shape: f32[128,128], index: 3, kind: input, shape index: {}]
  %s4 = inlined_call_operand.hbm [shape: f32[32,128], index: 4, kind: output, shape index: {}]
  %s5 = sld [smem:[#allocation0]]
  $region42: #{tpu_custom_call.1} parent=0
    _
  %s7 = ssub.s32 1, %s5
  %s8 = scalar_select 0, %s7, %s5
  $region1: #{tpu_custom_call.1} parent=0
    #allocation2 [shape = 'u8[4096]{0}', space=vmem, size = 0x1000, scoped, tag = 'input window, operand 0, single buffered']
    #allocation3 [shape = 's32[1]{0}', space=sflag, size = 0x4, scoped, tag = 'scoped memory for tpu_custom_call.1']
    #allocation4 [shape = 's32[1]{0}', space=sflag, size = 0x4, scoped, tag = 'scoped memory for tpu_custom_call.1']
    #allocation5 [shape = 'u8[16384]{0}', space=vmem, size = 0x4000, scoped, tag = 'input window, operand 1, single buffered']
    #allocation6 [shape = 's32[1]{0}', space=sflag, size = 0x4, scoped, tag = 'scoped memory for tpu_custom_call.1']
    #allocation7 [shape = 'u8[65536]{0}', space=vmem, size = 0x10000, scoped, tag = 'input window, operand 2, single buffered']
    #allocation8 [shape = 'u8[65536]{0}', space=vmem, size = 0x10000, scoped, tag = 'input window, operand 3, single buffered']
    #allocation9 [shape = 's32[1]{0}', space=sflag, size = 0x4, scoped, tag = 'scoped memory for tpu_custom_call.1']
    #allocation10 [shape = 'u8[16384]{0}', space=vmem, size = 0x4000, scoped, tag = 'output window, operand 0, single buffered']
    %9 = vsyncpa [#allocation3], 0
    %10 = vsyncpa [#allocation6], 0
    %11 = vsyncpa [#allocation9], 0
    %12 = vsyncpa [#allocation4], 0
    // Predicated region
    $region2: #{tpu_custom_call.1} parent=1 // pred_check
      _
    $region3: #{tpu_custom_call.1} parent=1 // pred_check_branch
      %14 = sbr.rel (0) target = $region5
    $region4: #{tpu_custom_call.1} parent=1 // pred_region
      %s16 = ssub.s32 128, 128
      %17 = vsyncadd [#allocation3], %s16
      %s19 = sshll.u32 [#allocation2], 4
      %s20 = int_to_ptr.vmem [resolvable:$true] %s19
      %22 = dma.hbm_to_vmem [thread:$0]  %s0, 128, %s20, [#allocation3]
    $region5: #{tpu_custom_call.1} parent=1 // pred_fallthru
      _
    // Predicated region
    $region6: #{tpu_custom_call.1} parent=1 // pred_check
      _
    $region7: #{tpu_custom_call.1} parent=1 // pred_check_branch
      %24 = sbr.rel (0) target = $region9
    $region8: #{tpu_custom_call.1} parent=1 // pred_region
      %s26 = ssub.s32 512, 512
      %27 = vsyncadd [#allocation6], %s26
      %s28 = sshll.u32 [#allocation5], 4
      %s29 = int_to_ptr.vmem [resolvable:$true] %s28
      %34 = dma.hbm_to_vmem [thread:$0]  %s1, 512, %s29, [#allocation6], 256, 256, 16
    $region9: #{tpu_custom_call.1} parent=1 // pred_fallthru
      _
    // Predicated region
    $region10: #{tpu_custom_call.1} parent=1 // pred_check
      _
    $region11: #{tpu_custom_call.1} parent=1 // pred_check_branch
      %36 = sbr.rel (0) target = $region13
    $region12: #{tpu_custom_call.1} parent=1 // pred_region
      %s38 = ssub.s32 2048, 2048
      %39 = vsyncadd [#allocation6], %s38
      %s40 = sshll.u32 [#allocation7], 4
      %s41 = int_to_ptr.vmem [resolvable:$true] %s40
      %46 = dma.hbm_to_vmem [thread:$0]  %s2, 2048, %s41, [#allocation6], 128, 128, 8
    $region13: #{tpu_custom_call.1} parent=1 // pred_fallthru
      _
    // Predicated region
    $region14: #{tpu_custom_call.1} parent=1 // pred_check
      _
    $region15: #{tpu_custom_call.1} parent=1 // pred_check_branch
      %48 = sbr.rel (0) target = $region17
    $region16: #{tpu_custom_call.1} parent=1 // pred_region
      %s50 = ssub.s32 2048, 2048
      %51 = vsyncadd [#allocation9], %s50
      %s52 = sshll.u32 [#allocation8], 4
      %s53 = int_to_ptr.vmem [resolvable:$true] %s52
      %58 = dma.hbm_to_vmem [thread:$0]  %s3, 2048, %s53, [#allocation9], 128, 128, 8
    $region17: #{tpu_custom_call.1} parent=1 // pred_fallthru
      _
    // Predicated region
    $region18: #{tpu_custom_call.1} parent=1 // pred_check
      _
    $region19: #{tpu_custom_call.1} parent=1 // pred_check_branch
      %60 = sbr.rel (0) target = $region21
    $region20: #{tpu_custom_call.1} parent=1 // pred_region
      %61 = dma.done [#allocation3], 128
    $region21: #{tpu_custom_call.1} parent=1 // pred_fallthru
      _
    // Predicated region
    $region22: #{tpu_custom_call.1} parent=1 // pred_check
      _
    $region23: #{tpu_custom_call.1} parent=1 // pred_check_branch
      %63 = sbr.rel (0) target = $region25
    $region24: #{tpu_custom_call.1} parent=1 // pred_region
      %64 = dma.done [#allocation6], 512
    $region25: #{tpu_custom_call.1} parent=1 // pred_fallthru
      _
    // Predicated region
    $region26: #{tpu_custom_call.1} parent=1 // pred_check
      _
    $region27: #{tpu_custom_call.1} parent=1 // pred_check_branch
      %66 = sbr.rel (0) target = $region29
    $region28: #{tpu_custom_call.1} parent=1 // pred_region
      %67 = dma.done [#allocation6], 2048
    $region29: #{tpu_custom_call.1} parent=1 // pred_fallthru
      _
    // Predicated region
    $region30: #{tpu_custom_call.1} parent=1 // pred_check
      _
    $region31: #{tpu_custom_call.1} parent=1 // pred_check_branch
      %69 = sbr.rel (0) target = $region33
    $region32: #{tpu_custom_call.1} parent=1 // pred_region
      %70 = dma.done [#allocation9], 2048
    $region33: #{tpu_custom_call.1} parent=1 // pred_fallthru
      _
    %v71 = vld [vmem:[#allocation2] sm:$0xff]
    %v72 = vld [vmem:[#allocation5] sm:$0xff]
    %v73 = vld [vmem:[#allocation5 + $0x8] sm:$0xff]
    %v74 = vld [vmem:[#allocation5 + $0x10] sm:$0xff]
    %v75 = vld [vmem:[#allocation5 + $0x18] sm:$0xff]
    %vm76 = vcmask 130048
    %v78 = vsel %vm76, %v71, 0
    %80 = vmatprep.subr.mxu0 %v73
    %81 = vmatpush1.msra.mxu0 %v72
    %82 = vmatprep.subr.mxu0 %v75
    %83 = vmatpush1.msra.mxu0 %v74
    %84 = vmatprep.subr.mxu0 0.0
    %85 = vmatpush1.msra.mxu0 0.0
    %86 = vmatprep.subr.mxu0 0.0
    %87 = vmatpush1.msra.mxu0 0.0
    %88 = vmatprep.subr.mxu0 0.0
    %89 = vmatpush1.msra.mxu0 0.0
    %90 = vmatprep.subr.mxu0 0.0
    %91 = vmatpush1.msra.mxu0 0.0
    %92 = vmatprep.subr.mxu0 0.0
    %93 = vmatpush1.msra.mxu0 0.0
    %94 = vmatprep.subr.mxu0 0.0
    %95 = vmatpush1.msra.mxu0 0.0
    %96 = vmatprep.subr.mxu0 0.0
    %97 = vmatpush1.msra.mxu0 0.0
    %98 = vmatprep.subr.mxu0 0.0
    %99 = vmatpush1.msra.mxu0 0.0
    %100 = vmatprep.subr.mxu0 0.0
    %101 = vmatpush1.msra.mxu0 0.0
    %102 = vmatprep.subr.mxu0 0.0
    %103 = vmatpush1.msra.mxu0 0.0
    %104 = vmatprep.subr.mxu0 0.0
    %105 = vmatpush1.msra.mxu0 0.0
    %106 = vmatprep.subr.mxu0 0.0
    %107 = vmatpush1.msra.mxu0 0.0
    %108 = vmatprep.subr.mxu0 0.0
    %109 = vmatpush1.msra.mxu0 0.0
    %110 = vmatprep.subr.mxu0 0.0
    %111 = vmatpush1.msra.mxu0 0.0
    %112 = vmatprep.subr.mxu0 0.0
    %113 = vmatpush1.msra.mxu0 0.0
    %114 = vmatprep.subr.mxu0 0.0
    %115 = vmatpush1.msra.mxu0 0.0
    %116 = vmatprep.subr.mxu0 0.0
    %117 = vmatpush1.msra.mxu0 0.0
    %118 = vmatprep.subr.mxu0 0.0
    %119 = vmatpush1.msra.mxu0 0.0
    %120 = vmatprep.subr.mxu0 0.0
    %121 = vmatpush1.msra.mxu0 0.0
    %122 = vmatprep.subr.mxu0 0.0
    %123 = vmatpush1.msra.mxu0 0.0
    %124 = vmatprep.subr.mxu0 0.0
    %125 = vmatpush1.msra.mxu0 0.0
    %126 = vmatprep.subr.mxu0 0.0
    %127 = vmatpush1.msra.mxu0 0.0
    %128 = vmatprep.subr.mxu0 0.0
    %129 = vmatpush1.msra.mxu0 0.0
    %130 = vmatprep.subr.mxu0 0.0
    %131 = vmatpush1.msra.mxu0 0.0
    %132 = vmatprep.subr.mxu0 0.0
    %133 = vmatpush1.msra.mxu0 0.0
    %134 = vmatprep.subr.mxu0 0.0
    %135 = vmatpush1.msra.mxu0 0.0
    %136 = vmatprep.subr.mxu0 0.0
    %137 = vmatpush1.msra.mxu0 0.0
    %138 = vmatprep.subr.mxu0 0.0
    %139 = vmatpush1.msra.mxu0 0.0
    %140 = vmatprep.subr.mxu0 0.0
    %141 = vmatpush1.msra.mxu0 0.0
    %142 = vmatprep.subr.mxu0 0.0
    %143 = vmatpush1.msra.mxu0 0.0
    %144 = vmatprep.mubr.f32.mxu0 0.0
    %145 = vmatmul.mubr.f32.gmra.mrb[0].mxu0 %v78
    %v146 = vpop.f32.mrb[0].mxu0
    %v147 = vadd.f32 0.0, %v146
    %v148 = vpop.f32.mrb[0].mxu0
    %v149 = vadd.f32 0.0, %v148
    %150 = vdwg.mxu0
    %v152 = vcombine.high %v147, %v147
    %v154 = vunpack.c.l.s4 1966171168
    %v155 = vunpack.c.0.s8 %v154
    %v156 = vlaneseq
    %v157 = vshrl.u32 %v156, 7
    %v158 = vsub.s32 %v155, %v157
    %v159 = vrot.slane %v147, %v158
    %v161 = vunpack.c.l.s4 1966171168
    %v162 = vunpack.c.0.s8 %v161
    %v163 = vlaneseq
    %v164 = vshrl.u32 %v163, 7
    %v165 = vsub.s32 %v162, %v164
    %v166 = vrot.slane %v152, %v165
    %v167 = vcombine.high %v159, %v159
    %v168 = vcombine.high %v166, %v166
    %v170 = vunpack.c.l.s4 1966171168
    %v171 = vunpack.c.0.s8 %v170
    %v172 = vlaneseq
    %v173 = vshrl.u32 %v172, 7
    %v174 = vsub.s32 %v171, %v173
    %v175 = vrot.slane %v159, %v174
    %v177 = vunpack.c.l.s4 1966171168
    %v178 = vunpack.c.0.s8 %v177
    %v179 = vlaneseq
    %v180 = vshrl.u32 %v179, 7
    %v181 = vsub.s32 %v178, %v180
    %v182 = vrot.slane %v166, %v181
    %v184 = vunpack.c.l.s4 1966171168
    %v185 = vunpack.c.0.s8 %v184
    %v186 = vlaneseq
    %v187 = vshrl.u32 %v186, 7
    %v188 = vsub.s32 %v185, %v187
    %v189 = vrot.slane %v167, %v188
    %v191 = vunpack.c.l.s4 1966171168
    %v192 = vunpack.c.0.s8 %v191
    %v193 = vlaneseq
    %v194 = vshrl.u32 %v193, 7
    %v195 = vsub.s32 %v192, %v194
    %v196 = vrot.slane %v168, %v195
    %v197 = vcombine.high %v175, %v175
    %v198 = vcombine.high %v182, %v182
    %v199 = vcombine.high %v189, %v189
    %v200 = vcombine.high %v196, %v196
    %v201 = vlaneseq
    %v202 = vshrl.u32 %v201, 7
    %v203 = vsub.s32 0, %v202
    %v204 = vrot.slane %v175, %v203
    %v205 = vlaneseq
    %v206 = vshrl.u32 %v205, 7
    %v207 = vsub.s32 0, %v206
    %v208 = vrot.slane %v189, %v207
    %v209 = vlaneseq
    %v210 = vshrl.u32 %v209, 7
    %v211 = vsub.s32 0, %v210
    %v212 = vrot.slane %v197, %v211
    %v213 = vlaneseq
    %v214 = vshrl.u32 %v213, 7
    %v215 = vsub.s32 0, %v214
    %v216 = vrot.slane %v199, %v215
    %v217 = vlaneseq
    %v218 = vshrl.u32 %v217, 7
    %v219 = vsub.s32 0, %v218
    %v220 = vrot.slane %v182, %v219
    %v221 = vlaneseq
    %v222 = vshrl.u32 %v221, 7
    %v223 = vsub.s32 0, %v222
    %v224 = vrot.slane %v196, %v223
    %v225 = vlaneseq
    %v226 = vshrl.u32 %v225, 7
    %v227 = vsub.s32 0, %v226
    %v228 = vrot.slane %v198, %v227
    %v229 = vlaneseq
    %v230 = vshrl.u32 %v229, 7
    %v231 = vsub.s32 0, %v230
    %v232 = vrot.slane %v200, %v231
    %v242 = vcombine.high %v149, %v149
    %v244 = vunpack.c.l.s4 1966171168
    %v245 = vunpack.c.0.s8 %v244
    %v246 = vlaneseq
    %v247 = vshrl.u32 %v246, 7
    %v248 = vsub.s32 %v245, %v247
    %v249 = vrot.slane %v149, %v248
    %v251 = vunpack.c.l.s4 1966171168
    %v252 = vunpack.c.0.s8 %v251
    %v253 = vlaneseq
    %v254 = vshrl.u32 %v253, 7
    %v255 = vsub.s32 %v252, %v254
    %v256 = vrot.slane %v242, %v255
    %v257 = vcombine.high %v249, %v249
    %v258 = vcombine.high %v256, %v256
    %v260 = vunpack.c.l.s4 1966171168
    %v261 = vunpack.c.0.s8 %v260
    %v262 = vlaneseq
    %v263 = vshrl.u32 %v262, 7
    %v264 = vsub.s32 %v261, %v263
    %v265 = vrot.slane %v249, %v264
    %v267 = vunpack.c.l.s4 1966171168
    %v268 = vunpack.c.0.s8 %v267
    %v269 = vlaneseq
    %v270 = vshrl.u32 %v269, 7
    %v271 = vsub.s32 %v268, %v270
    %v272 = vrot.slane %v256, %v271
    %v274 = vunpack.c.l.s4 1966171168
    %v275 = vunpack.c.0.s8 %v274
    %v276 = vlaneseq
    %v277 = vshrl.u32 %v276, 7
    %v278 = vsub.s32 %v275, %v277
    %v279 = vrot.slane %v257, %v278
    %v281 = vunpack.c.l.s4 1966171168
    %v282 = vunpack.c.0.s8 %v281
    %v283 = vlaneseq
    %v284 = vshrl.u32 %v283, 7
    %v285 = vsub.s32 %v282, %v284
    %v286 = vrot.slane %v258, %v285
    %v287 = vcombine.high %v265, %v265
    %v288 = vcombine.high %v272, %v272
    %v289 = vcombine.high %v279, %v279
    %v290 = vcombine.high %v286, %v286
    %v291 = vlaneseq
    %v292 = vshrl.u32 %v291, 7
    %v293 = vsub.s32 0, %v292
    %v294 = vrot.slane %v265, %v293
    %v295 = vlaneseq
    %v296 = vshrl.u32 %v295, 7
    %v297 = vsub.s32 0, %v296
    %v298 = vrot.slane %v279, %v297
    %v299 = vlaneseq
    %v300 = vshrl.u32 %v299, 7
    %v301 = vsub.s32 0, %v300
    %v302 = vrot.slane %v287, %v301
    %v303 = vlaneseq
    %v304 = vshrl.u32 %v303, 7
    %v305 = vsub.s32 0, %v304
    %v306 = vrot.slane %v289, %v305
    %v307 = vlaneseq
    %v308 = vshrl.u32 %v307, 7
    %v309 = vsub.s32 0, %v308
    %v310 = vrot.slane %v272, %v309
    %v311 = vlaneseq
    %v312 = vshrl.u32 %v311, 7
    %v313 = vsub.s32 0, %v312
    %v314 = vrot.slane %v286, %v313
    %v315 = vlaneseq
    %v316 = vshrl.u32 %v315, 7
    %v317 = vsub.s32 0, %v316
    %v318 = vrot.slane %v288, %v317
    %v319 = vlaneseq
    %v320 = vshrl.u32 %v319, 7
    %v321 = vsub.s32 0, %v320
    %v322 = vrot.slane %v290, %v321
    %v333 = vmul.f32 %v204, %v147
    %v334 = vmul.f32 %v208, %v147
    %v335 = vmul.f32 %v212, %v147
    %v336 = vmul.f32 %v216, %v147
    %v337 = vmul.f32 %v220, %v152
    %v338 = vmul.f32 %v224, %v152
    %v339 = vmul.f32 %v228, %v152
    %v340 = vmul.f32 %v232, %v152
    %v341 = vmul.f32 %v294, %v149
    %v342 = vmul.f32 %v298, %v149
    %v343 = vmul.f32 %v302, %v149
    %v344 = vmul.f32 %v306, %v149
    %v345 = vmul.f32 %v310, %v242
    %v346 = vmul.f32 %v314, %v242
    %v347 = vmul.f32 %v318, %v242
    %v348 = vmul.f32 %v322, %v242
    %v349 = vadd.f32 %v333, %v341
    %v350 = vadd.f32 %v334, %v342
    %v351 = vadd.f32 %v335, %v343
    %v352 = vadd.f32 %v336, %v344
    %v353 = vadd.f32 %v337, %v345
    %v354 = vadd.f32 %v338, %v346
    %v355 = vadd.f32 %v339, %v347
    %v356 = vadd.f32 %v340, %v348
    %v357 = vmul.f32 %v294, %v147
    %v358 = vmul.f32 %v298, %v147
    %v359 = vmul.f32 %v302, %v147
    %v360 = vmul.f32 %v306, %v147
    %v361 = vmul.f32 %v310, %v152
    %v362 = vmul.f32 %v314, %v152
    %v363 = vmul.f32 %v318, %v152
    %v364 = vmul.f32 %v322, %v152
    %v365 = vmul.f32 %v204, %v149
    %v366 = vmul.f32 %v208, %v149
    %v367 = vmul.f32 %v212, %v149
    %v368 = vmul.f32 %v216, %v149
    %v369 = vmul.f32 %v220, %v242
    %v370 = vmul.f32 %v224, %v242
    %v371 = vmul.f32 %v228, %v242
    %v372 = vmul.f32 %v232, %v242
    %v373 = vsub.f32 %v357, %v365
    %v374 = vsub.f32 %v358, %v366
    %v375 = vsub.f32 %v359, %v367
    %v376 = vsub.f32 %v360, %v368
    %v377 = vsub.f32 %v361, %v369
    %v378 = vsub.f32 %v362, %v370
    %v379 = vsub.f32 %v363, %v371
    %v380 = vsub.f32 %v364, %v372
    %v381 = vld [vmem:[#allocation7] sm:$0xff]
    %v382 = vld [vmem:[#allocation7 + $0x8] sm:$0xff]
    %v383 = vld [vmem:[#allocation7 + $0x10] sm:$0xff]
    %v384 = vld [vmem:[#allocation7 + $0x18] sm:$0xff]
    %v385 = vld [vmem:[#allocation7 + $0x20] sm:$0xff]
    %v386 = vld [vmem:[#allocation7 + $0x28] sm:$0xff]
    %v387 = vld [vmem:[#allocation7 + $0x30] sm:$0xff]
    %v388 = vld [vmem:[#allocation7 + $0x38] sm:$0xff]
    %v389 = vld [vmem:[#allocation7 + $0x40] sm:$0xff]
    %v390 = vld [vmem:[#allocation7 + $0x48] sm:$0xff]
    %v391 = vld [vmem:[#allocation7 + $0x50] sm:$0xff]
    %v392 = vld [vmem:[#allocation7 + $0x58] sm:$0xff]
    %v393 = vld [vmem:[#allocation7 + $0x60] sm:$0xff]
    %v394 = vld [vmem:[#allocation7 + $0x68] sm:$0xff]
    %v395 = vld [vmem:[#allocation7 + $0x70] sm:$0xff]
    %v396 = vld [vmem:[#allocation7 + $0x78] sm:$0xff]
    %v397 = vld [vmem:[#allocation8] sm:$0xff]
    %v398 = vld [vmem:[#allocation8 + $0x8] sm:$0xff]
    %v399 = vld [vmem:[#allocation8 + $0x10] sm:$0xff]
    %v400 = vld [vmem:[#allocation8 + $0x18] sm:$0xff]
    %v401 = vld [vmem:[#allocation8 + $0x20] sm:$0xff]
    %v402 = vld [vmem:[#allocation8 + $0x28] sm:$0xff]
    %v403 = vld [vmem:[#allocation8 + $0x30] sm:$0xff]
    %v404 = vld [vmem:[#allocation8 + $0x38] sm:$0xff]
    %v405 = vld [vmem:[#allocation8 + $0x40] sm:$0xff]
    %v406 = vld [vmem:[#allocation8 + $0x48] sm:$0xff]
    %v407 = vld [vmem:[#allocation8 + $0x50] sm:$0xff]
    %v408 = vld [vmem:[#allocation8 + $0x58] sm:$0xff]
    %v409 = vld [vmem:[#allocation8 + $0x60] sm:$0xff]
    %v410 = vld [vmem:[#allocation8 + $0x68] sm:$0xff]
    %v411 = vld [vmem:[#allocation8 + $0x70] sm:$0xff]
    %v412 = vld [vmem:[#allocation8 + $0x78] sm:$0xff]
    %v421 = vcombine.low %v373, %v374
    %v422 = vcombine.low %v375, %v376
    %v423 = vcombine.low %v377, %v378
    %v424 = vcombine.low %v379, %v380
    %429 = vmatprep.subr.mxu0 0.0
    %430 = vmatpush1.msra.mxu0 %v397
    %431 = vmatprep.subr.mxu0 0.0
    %432 = vmatpush1.msra.mxu0 %v398
    %433 = vmatprep.subr.mxu0 0.0
    %434 = vmatpush1.msra.mxu0 %v399
    %435 = vmatprep.subr.mxu0 0.0
    %436 = vmatpush1.msra.mxu0 %v400
    %437 = vmatprep.subr.mxu0 0.0
    %438 = vmatpush1.msra.mxu0 %v401
    %439 = vmatprep.subr.mxu0 0.0
    %440 = vmatpush1.msra.mxu0 %v402
    %441 = vmatprep.subr.mxu0 0.0
    %442 = vmatpush1.msra.mxu0 %v403
    %443 = vmatprep.subr.mxu0 0.0
    %444 = vmatpush1.msra.mxu0 %v404
    %445 = vmatprep.subr.mxu0 0.0
    %446 = vmatpush1.msra.mxu0 %v405
    %447 = vmatprep.subr.mxu0 0.0
    %448 = vmatpush1.msra.mxu0 %v406
    %449 = vmatprep.subr.mxu0 0.0
    %450 = vmatpush1.msra.mxu0 %v407
    %451 = vmatprep.subr.mxu0 0.0
    %452 = vmatpush1.msra.mxu0 %v408
    %453 = vmatprep.subr.mxu0 0.0
    %454 = vmatpush1.msra.mxu0 %v409
    %455 = vmatprep.subr.mxu0 0.0
    %456 = vmatpush1.msra.mxu0 %v410
    %457 = vmatprep.subr.mxu0 0.0
    %458 = vmatpush1.msra.mxu0 %v411
    %459 = vmatprep.subr.mxu0 0.0
    %460 = vmatpush1.msra.mxu0 %v412
    %461 = vmatprep.subr.mxu0 0.0
    %462 = vmatpush1.msra.mxu0 0.0
    %463 = vmatprep.subr.mxu0 0.0
    %464 = vmatpush1.msra.mxu0 0.0
    %465 = vmatprep.subr.mxu0 0.0
    %466 = vmatpush1.msra.mxu0 0.0
    %467 = vmatprep.subr.mxu0 0.0
    %468 = vmatpush1.msra.mxu0 0.0
    %469 = vmatprep.subr.mxu0 0.0
    %470 = vmatpush1.msra.mxu0 0.0
    %471 = vmatprep.subr.mxu0 0.0
    %472 = vmatpush1.msra.mxu0 0.0
    %473 = vmatprep.subr.mxu0 0.0
    %474 = vmatpush1.msra.mxu0 0.0
    %475 = vmatprep.subr.mxu0 0.0
    %476 = vmatpush1.msra.mxu0 0.0
    %477 = vmatprep.subr.mxu0 0.0
    %478 = vmatpush1.msra.mxu0 0.0
    %479 = vmatprep.subr.mxu0 0.0
    %480 = vmatpush1.msra.mxu0 0.0
    %481 = vmatprep.subr.mxu0 0.0
    %482 = vmatpush1.msra.mxu0 0.0
    %483 = vmatprep.subr.mxu0 0.0
    %484 = vmatpush1.msra.mxu0 0.0
    %485 = vmatprep.subr.mxu0 0.0
    %486 = vmatpush1.msra.mxu0 0.0
    %487 = vmatprep.subr.mxu0 0.0
    %488 = vmatpush1.msra.mxu0 0.0
    %489 = vmatprep.subr.mxu0 0.0
    %490 = vmatpush1.msra.mxu0 0.0
    %491 = vmatprep.subr.mxu0 0.0
    %492 = vmatpush1.msra.mxu0 0.0
    %493 = vmatprep.mubr.f32.mxu0 0.0
    %494 = vmatmul.mubr.f32.gmra.mrb[0].mxu0 %v421
    %v495 = vpop.f32.mrb[0].mxu0
    %v496 = vadd.f32 0.0, %v495
    %v497 = vpop.f32.mrb[0].mxu0
    %498 = vmatprep.mubr.f32.mxu0 0.0
    %499 = vmatmul.mubr.f32.gmra.mrb[0].mxu0 %v422
    %v500 = vpop.f32.mrb[0].mxu0
    %v501 = vadd.f32 0.0, %v500
    %v502 = vpop.f32.mrb[0].mxu0
    %503 = vmatprep.mubr.f32.mxu0 0.0
    %504 = vmatmul.mubr.f32.gmra.mrb[0].mxu0 %v423
    %v505 = vpop.f32.mrb[0].mxu0
    %v506 = vadd.f32 0.0, %v505
    %v507 = vpop.f32.mrb[0].mxu0
    %508 = vmatprep.mubr.f32.mxu0 0.0
    %509 = vmatmul.mubr.f32.gmra.mrb[0].mxu0 %v424
    %v510 = vpop.f32.mrb[0].mxu0
    %v511 = vadd.f32 0.0, %v510
    %v512 = vpop.f32.mrb[0].mxu0
    %513 = vdwg.mxu0
    %v522 = vcombine.low %v349, %v350
    %v523 = vcombine.low %v351, %v352
    %v524 = vcombine.low %v353, %v354
    %v525 = vcombine.low %v355, %v356
    %530 = vmatprep.subr.mxu0 0.0
    %531 = vmatpush1.msra.mxu0 %v381
    %532 = vmatprep.subr.mxu0 0.0
    %533 = vmatpush1.msra.mxu0 %v382
    %534 = vmatprep.subr.mxu0 0.0
    %535 = vmatpush1.msra.mxu0 %v383
    %536 = vmatprep.subr.mxu0 0.0
    %537 = vmatpush1.msra.mxu0 %v384
    %538 = vmatprep.subr.mxu0 0.0
    %539 = vmatpush1.msra.mxu0 %v385
    %540 = vmatprep.subr.mxu0 0.0
    %541 = vmatpush1.msra.mxu0 %v386
    %542 = vmatprep.subr.mxu0 0.0
    %543 = vmatpush1.msra.mxu0 %v387
    %544 = vmatprep.subr.mxu0 0.0
    %545 = vmatpush1.msra.mxu0 %v388
    %546 = vmatprep.subr.mxu0 0.0
    %547 = vmatpush1.msra.mxu0 %v389
    %548 = vmatprep.subr.mxu0 0.0
    %549 = vmatpush1.msra.mxu0 %v390
    %550 = vmatprep.subr.mxu0 0.0
    %551 = vmatpush1.msra.mxu0 %v391
    %552 = vmatprep.subr.mxu0 0.0
    %553 = vmatpush1.msra.mxu0 %v392
    %554 = vmatprep.subr.mxu0 0.0
    %555 = vmatpush1.msra.mxu0 %v393
    %556 = vmatprep.subr.mxu0 0.0
    %557 = vmatpush1.msra.mxu0 %v394
    %558 = vmatprep.subr.mxu0 0.0
    %559 = vmatpush1.msra.mxu0 %v395
    %560 = vmatprep.subr.mxu0 0.0
    %561 = vmatpush1.msra.mxu0 %v396
    %562 = vmatprep.subr.mxu0 0.0
    %563 = vmatpush1.msra.mxu0 0.0
    %564 = vmatprep.subr.mxu0 0.0
    %565 = vmatpush1.msra.mxu0 0.0
    %566 = vmatprep.subr.mxu0 0.0
    %567 = vmatpush1.msra.mxu0 0.0
    %568 = vmatprep.subr.mxu0 0.0
    %569 = vmatpush1.msra.mxu0 0.0
    %570 = vmatprep.subr.mxu0 0.0
    %571 = vmatpush1.msra.mxu0 0.0
    %572 = vmatprep.subr.mxu0 0.0
    %573 = vmatpush1.msra.mxu0 0.0
    %574 = vmatprep.subr.mxu0 0.0
    %575 = vmatpush1.msra.mxu0 0.0
    %576 = vmatprep.subr.mxu0 0.0
    %577 = vmatpush1.msra.mxu0 0.0
    %578 = vmatprep.subr.mxu0 0.0
    %579 = vmatpush1.msra.mxu0 0.0
    %580 = vmatprep.subr.mxu0 0.0
    %581 = vmatpush1.msra.mxu0 0.0
    %582 = vmatprep.subr.mxu0 0.0
    %583 = vmatpush1.msra.mxu0 0.0
    %584 = vmatprep.subr.mxu0 0.0
    %585 = vmatpush1.msra.mxu0 0.0
    %586 = vmatprep.subr.mxu0 0.0
    %587 = vmatpush1.msra.mxu0 0.0
    %588 = vmatprep.subr.mxu0 0.0
    %589 = vmatpush1.msra.mxu0 0.0
    %590 = vmatprep.subr.mxu0 0.0
    %591 = vmatpush1.msra.mxu0 0.0
    %592 = vmatprep.subr.mxu0 0.0
    %593 = vmatpush1.msra.mxu0 0.0
    %594 = vmatprep.mubr.f32.mxu0 0.0
    %595 = vmatmul.mubr.f32.gmra.mrb[0].mxu0 %v522
    %v596 = vpop.f32.mrb[0].mxu0
    %v597 = vadd.f32 %v496, %v596
    %v598 = vpop.f32.mrb[0].mxu0
    %599 = vmatprep.mubr.f32.mxu0 0.0
    %600 = vmatmul.mubr.f32.gmra.mrb[0].mxu0 %v523
    %v601 = vpop.f32.mrb[0].mxu0
    %v602 = vadd.f32 %v501, %v601
    %v603 = vpop.f32.mrb[0].mxu0
    %604 = vmatprep.mubr.f32.mxu0 0.0
    %605 = vmatmul.mubr.f32.gmra.mrb[0].mxu0 %v524
    %v606 = vpop.f32.mrb[0].mxu0
    %v607 = vadd.f32 %v506, %v606
    %v608 = vpop.f32.mrb[0].mxu0
    %609 = vmatprep.mubr.f32.mxu0 0.0
    %610 = vmatmul.mubr.f32.gmra.mrb[0].mxu0 %v525
    %v611 = vpop.f32.mrb[0].mxu0
    %v612 = vadd.f32 %v511, %v611
    %v613 = vpop.f32.mrb[0].mxu0
    %614 = vdwg.mxu0
    %615 = vst [vmem:[#allocation10] sm:$0xff] %v597
    %616 = vst [vmem:[#allocation10 + $0x8] sm:$0xff] %v602
    %617 = vst [vmem:[#allocation10 + $0x10] sm:$0xff] %v607
    %618 = vst [vmem:[#allocation10 + $0x18] sm:$0xff] %v612
    // Predicated region
    $region34: #{tpu_custom_call.1} parent=1 // pred_check
      _
    $region35: #{tpu_custom_call.1} parent=1 // pred_check_branch
      %620 = sbr.rel (0) target = $region37
    $region36: #{tpu_custom_call.1} parent=1 // pred_region
      %s622 = ssub.s32 512, 512
      %623 = vsyncadd [#allocation4], %s622
      %s624 = sshll.u32 [#allocation10], 4
      %s625 = int_to_ptr.vmem [resolvable:$true] %s624
      %630 = dma.vmem_to_hbm [thread:$0]  %s625, 512, %s4, [#allocation4], 128, 128, 8
    $region37: #{tpu_custom_call.1} parent=1 // pred_fallthru
      _
    // Predicated region
    $region38: #{tpu_custom_call.1} parent=1 // pred_check
      _
    $region39: #{tpu_custom_call.1} parent=1 // pred_check_branch
      %632 = sbr.rel (0) target = $region41
    $region40: #{tpu_custom_call.1} parent=1 // pred_region
      %633 = dma.done [#allocation4], 512
    $region41: #{tpu_custom_call.1} parent=1 // pred_fallthru
      _
    %634 = vsyncpa [#allocation3], 1
    %635 = vsyncpa [#allocation6], 1
    %636 = vsyncpa [#allocation9], 1
    %637 = vsyncpa [#allocation4], 1

// kernel: tpu_custom_call.1
$region0: #{tpu_custom_call.1}
  #allocation0 [shape = 'u32[]', space=smem, size = 0x4, offset = 0x4, fixed_abs, tag = 'smem constant byte address 0x4 - core index']
  #allocation1 [shape = 'u32[144,128]{1,0:T(1,128)}', space=vmem, size = 0x12000, scoped, tag = 'internal scratch']
  %s0 = inlined_call_operand.hbm [shape: f32[8,16], index: 0, kind: input, shape index: {}]
  %s1 = inlined_call_operand.hbm [shape: f32[16,256], index: 1, kind: input, shape index: {}]
  %s2 = inlined_call_operand.hbm [shape: f32[128,128], index: 2, kind: input, shape index: {}]
  %s3 = inlined_call_operand.hbm [shape: f32[128,128], index: 3, kind: input, shape index: {}]
  %s4 = inlined_call_operand.hbm [shape: f32[32,128], index: 4, kind: output, shape index: {}]
  %s5 = sld [smem:[#allocation0]]
  $region42: #{tpu_custom_call.1} parent=0
    _
  %s7 = ssub.s32 1, %s5
  %s8 = scalar_select 0, %s7, %s5
  $region1: #{tpu_custom_call.1} parent=0
    #allocation2 [shape = 'u8[4096]{0}', space=vmem, size = 0x1000, scoped, tag = 'input window, operand 0, single buffered']
    #allocation3 [shape = 's32[1]{0}', space=sflag, size = 0x4, scoped, tag = 'scoped memory for tpu_custom_call.1']
    #allocation4 [shape = 's32[1]{0}', space=sflag, size = 0x4, scoped, tag = 'scoped memory for tpu_custom_call.1']
    #allocation5 [shape = 'u8[16384]{0}', space=vmem, size = 0x4000, scoped, tag = 'input window, operand 1, single buffered']
    #allocation6 [shape = 's32[1]{0}', space=sflag, size = 0x4, scoped, tag = 'scoped memory for tpu_custom_call.1']
    #allocation7 [shape = 'u8[65536]{0}', space=vmem, size = 0x10000, scoped, tag = 'input window, operand 2, single buffered']
    #allocation8 [shape = 'u8[65536]{0}', space=vmem, size = 0x10000, scoped, tag = 'input window, operand 3, single buffered']
    #allocation9 [shape = 's32[1]{0}', space=sflag, size = 0x4, scoped, tag = 'scoped memory for tpu_custom_call.1']
    #allocation10 [shape = 'u8[16384]{0}', space=vmem, size = 0x4000, scoped, tag = 'output window, operand 0, single buffered']
    %9 = vsyncpa [#allocation3], 0
    %10 = vsyncpa [#allocation6], 0
    %11 = vsyncpa [#allocation9], 0
    %12 = vsyncpa [#allocation4], 0
    // Predicated region
    $region2: #{tpu_custom_call.1} parent=1 // pred_check
      _
    $region3: #{tpu_custom_call.1} parent=1 // pred_check_branch
      %14 = sbr.rel (0) target = $region5
    $region4: #{tpu_custom_call.1} parent=1 // pred_region
      %s16 = ssub.s32 128, 128
      %17 = vsyncadd [#allocation3], %s16
      %s19 = sshll.u32 [#allocation2], 4
      %s20 = int_to_ptr.vmem [resolvable:$true] %s19
      %22 = dma.hbm_to_vmem [thread:$0]  %s0, 128, %s20, [#allocation3]
    $region5: #{tpu_custom_call.1} parent=1 // pred_fallthru
      _
    // Predicated region
    $region6: #{tpu_custom_call.1} parent=1 // pred_check
      _
    $region7: #{tpu_custom_call.1} parent=1 // pred_check_branch
      %24 = sbr.rel (0) target = $region9
    $region8: #{tpu_custom_call.1} parent=1 // pred_region
      %s26 = ssub.s32 512, 512
      %27 = vsyncadd [#allocation6], %s26
      %s28 = sshll.u32 [#allocation5], 4
      %s29 = int_to_ptr.vmem [resolvable:$true] %s28
      %34 = dma.hbm_to_vmem [thread:$0]  %s1, 512, %s29, [#allocation6], 256, 256, 16
    $region9: #{tpu_custom_call.1} parent=1 // pred_fallthru
      _
    // Predicated region
    $region10: #{tpu_custom_call.1} parent=1 // pred_check
      _
    $region11: #{tpu_custom_call.1} parent=1 // pred_check_branch
      %36 = sbr.rel (0) target = $region13
    $region12: #{tpu_custom_call.1} parent=1 // pred_region
      %s38 = ssub.s32 2048, 2048
      %39 = vsyncadd [#allocation6], %s38
      %s40 = sshll.u32 [#allocation7], 4
      %s41 = int_to_ptr.vmem [resolvable:$true] %s40
      %46 = dma.hbm_to_vmem [thread:$0]  %s2, 2048, %s41, [#allocation6], 128, 128, 8
    $region13: #{tpu_custom_call.1} parent=1 // pred_fallthru
      _
    // Predicated region
    $region14: #{tpu_custom_call.1} parent=1 // pred_check
      _
    $region15: #{tpu_custom_call.1} parent=1 // pred_check_branch
      %48 = sbr.rel (0) target = $region17
    $region16: #{tpu_custom_call.1} parent=1 // pred_region
      %s50 = ssub.s32 2048, 2048
      %51 = vsyncadd [#allocation9], %s50
      %s52 = sshll.u32 [#allocation8], 4
      %s53 = int_to_ptr.vmem [resolvable:$true] %s52
      %58 = dma.hbm_to_vmem [thread:$0]  %s3, 2048, %s53, [#allocation9], 128, 128, 8
    $region17: #{tpu_custom_call.1} parent=1 // pred_fallthru
      _
    // Predicated region
    $region18: #{tpu_custom_call.1} parent=1 // pred_check
      _
    $region19: #{tpu_custom_call.1} parent=1 // pred_check_branch
      %60 = sbr.rel (0) target = $region21
    $region20: #{tpu_custom_call.1} parent=1 // pred_region
      %61 = dma.done [#allocation3], 128
    $region21: #{tpu_custom_call.1} parent=1 // pred_fallthru
      _
    // Predicated region
    $region22: #{tpu_custom_call.1} parent=1 // pred_check
      _
    $region23: #{tpu_custom_call.1} parent=1 // pred_check_branch
      %63 = sbr.rel (0) target = $region25
    $region24: #{tpu_custom_call.1} parent=1 // pred_region
      %64 = dma.done [#allocation6], 512
    $region25: #{tpu_custom_call.1} parent=1 // pred_fallthru
      _
    // Predicated region
    $region26: #{tpu_custom_call.1} parent=1 // pred_check
      _
    $region27: #{tpu_custom_call.1} parent=1 // pred_check_branch
      %66 = sbr.rel (0) target = $region29
    $region28: #{tpu_custom_call.1} parent=1 // pred_region
      %67 = dma.done [#allocation6], 2048
    $region29: #{tpu_custom_call.1} parent=1 // pred_fallthru
      _
    // Predicated region
    $region30: #{tpu_custom_call.1} parent=1 // pred_check
      _
    $region31: #{tpu_custom_call.1} parent=1 // pred_check_branch
      %69 = sbr.rel (0) target = $region33
    $region32: #{tpu_custom_call.1} parent=1 // pred_region
      %70 = dma.done [#allocation9], 2048
    $region33: #{tpu_custom_call.1} parent=1 // pred_fallthru
      _
    %v71 = vld [vmem:[#allocation2] sm:$0xff]
    %v72 = vld [vmem:[#allocation5] sm:$0xff]
    %v73 = vld [vmem:[#allocation5 + $0x8] sm:$0xff]
    %v74 = vld [vmem:[#allocation5 + $0x10] sm:$0xff]
    %v75 = vld [vmem:[#allocation5 + $0x18] sm:$0xff]
    %vm76 = vcmask 130048
    %v78 = vsel %vm76, %v71, 0
    %80 = vmatprep.subr.mxu0 %v73
    %81 = vmatpush1.msra.mxu0 %v72
    %82 = vmatprep.subr.mxu0 %v75
    %83 = vmatpush1.msra.mxu0 %v74
    %84 = vmatprep.subr.mxu0 0.0
    %85 = vmatpush1.msra.mxu0 0.0
    %86 = vmatprep.subr.mxu0 0.0
    %87 = vmatpush1.msra.mxu0 0.0
    %88 = vmatprep.subr.mxu0 0.0
    %89 = vmatpush1.msra.mxu0 0.0
    %90 = vmatprep.subr.mxu0 0.0
    %91 = vmatpush1.msra.mxu0 0.0
    %92 = vmatprep.subr.mxu0 0.0
    %93 = vmatpush1.msra.mxu0 0.0
    %94 = vmatprep.subr.mxu0 0.0
    %95 = vmatpush1.msra.mxu0 0.0
    %96 = vmatprep.subr.mxu0 0.0
    %97 = vmatpush1.msra.mxu0 0.0
    %98 = vmatprep.subr.mxu0 0.0
    %99 = vmatpush1.msra.mxu0 0.0
    %100 = vmatprep.subr.mxu0 0.0
    %101 = vmatpush1.msra.mxu0 0.0
    %102 = vmatprep.subr.mxu0 0.0
    %103 = vmatpush1.msra.mxu0 0.0
    %104 = vmatprep.subr.mxu0 0.0
    %105 = vmatpush1.msra.mxu0 0.0
    %106 = vmatprep.subr.mxu0 0.0
    %107 = vmatpush1.msra.mxu0 0.0
    %108 = vmatprep.subr.mxu0 0.0
    %109 = vmatpush1.msra.mxu0 0.0
    %110 = vmatprep.subr.mxu0 0.0
    %111 = vmatpush1.msra.mxu0 0.0
    %112 = vmatprep.subr.mxu0 0.0
    %113 = vmatpush1.msra.mxu0 0.0
    %114 = vmatprep.subr.mxu0 0.0
    %115 = vmatpush1.msra.mxu0 0.0
    %116 = vmatprep.subr.mxu0 0.0
    %117 = vmatpush1.msra.mxu0 0.0
    %118 = vmatprep.subr.mxu0 0.0
    %119 = vmatpush1.msra.mxu0 0.0
    %120 = vmatprep.subr.mxu0 0.0
    %121 = vmatpush1.msra.mxu0 0.0
    %122 = vmatprep.subr.mxu0 0.0
    %123 = vmatpush1.msra.mxu0 0.0
    %124 = vmatprep.subr.mxu0 0.0
    %125 = vmatpush1.msra.mxu0 0.0
    %126 = vmatprep.subr.mxu0 0.0
    %127 = vmatpush1.msra.mxu0 0.0
    %128 = vmatprep.subr.mxu0 0.0
    %129 = vmatpush1.msra.mxu0 0.0
    %130 = vmatprep.subr.mxu0 0.0
    %131 = vmatpush1.msra.mxu0 0.0
    %132 = vmatprep.subr.mxu0 0.0
    %133 = vmatpush1.msra.mxu0 0.0
    %134 = vmatprep.subr.mxu0 0.0
    %135 = vmatpush1.msra.mxu0 0.0
    %136 = vmatprep.subr.mxu0 0.0
    %137 = vmatpush1.msra.mxu0 0.0
    %138 = vmatprep.subr.mxu0 0.0
    %139 = vmatpush1.msra.mxu0 0.0
    %140 = vmatprep.subr.mxu0 0.0
    %141 = vmatpush1.msra.mxu0 0.0
    %142 = vmatprep.subr.mxu0 0.0
    %143 = vmatpush1.msra.mxu0 0.0
    %144 = vmatprep.mubr.f32.mxu0 0.0
    %145 = vmatmul.mubr.f32.gmra.mrb[0].mxu0 %v78
    %v146 = vpop.f32.mrb[0].mxu0
    %v147 = vadd.f32 0.0, %v146
    %v148 = vpop.f32.mrb[0].mxu0
    %v149 = vadd.f32 0.0, %v148
    %150 = vdwg.mxu0
    %v152 = vcombine.high %v147, %v147
    %v154 = vunpack.c.l.s4 1966171168
    %v155 = vunpack.c.0.s8 %v154
    %v156 = vlaneseq
    %v157 = vshrl.u32 %v156, 7
    %v158 = vsub.s32 %v155, %v157
    %v159 = vrot.slane %v147, %v158
    %v161 = vunpack.c.l.s4 1966171168
    %v162 = vunpack.c.0.s8 %v161
    %v163 = vlaneseq
    %v164 = vshrl.u32 %v163, 7
    %v165 = vsub.s32 %v162, %v164
    %v166 = vrot.slane %v152, %v165
    %v167 = vcombine.high %v159, %v159
    %v168 = vcombine.high %v166, %v166
    %v170 = vunpack.c.l.s4 1966171168
    %v171 = vunpack.c.0.s8 %v170
    %v172 = vlaneseq
    %v173 = vshrl.u32 %v172, 7
    %v174 = vsub.s32 %v171, %v173
    %v175 = vrot.slane %v159, %v174
    %v177 = vunpack.c.l.s4 1966171168
    %v178 = vunpack.c.0.s8 %v177
    %v179 = vlaneseq
    %v180 = vshrl.u32 %v179, 7
    %v181 = vsub.s32 %v178, %v180
    %v182 = vrot.slane %v166, %v181
    %v184 = vunpack.c.l.s4 1966171168
    %v185 = vunpack.c.0.s8 %v184
    %v186 = vlaneseq
    %v187 = vshrl.u32 %v186, 7
    %v188 = vsub.s32 %v185, %v187
    %v189 = vrot.slane %v167, %v188
    %v191 = vunpack.c.l.s4 1966171168
    %v192 = vunpack.c.0.s8 %v191
    %v193 = vlaneseq
    %v194 = vshrl.u32 %v193, 7
    %v195 = vsub.s32 %v192, %v194
    %v196 = vrot.slane %v168, %v195
    %v197 = vcombine.high %v175, %v175
    %v198 = vcombine.high %v182, %v182
    %v199 = vcombine.high %v189, %v189
    %v200 = vcombine.high %v196, %v196
    %v201 = vlaneseq
    %v202 = vshrl.u32 %v201, 7
    %v203 = vsub.s32 0, %v202
    %v204 = vrot.slane %v175, %v203
    %v205 = vlaneseq
    %v206 = vshrl.u32 %v205, 7
    %v207 = vsub.s32 0, %v206
    %v208 = vrot.slane %v189, %v207
    %v209 = vlaneseq
    %v210 = vshrl.u32 %v209, 7
    %v211 = vsub.s32 0, %v210
    %v212 = vrot.slane %v197, %v211
    %v213 = vlaneseq
    %v214 = vshrl.u32 %v213, 7
    %v215 = vsub.s32 0, %v214
    %v216 = vrot.slane %v199, %v215
    %v217 = vlaneseq
    %v218 = vshrl.u32 %v217, 7
    %v219 = vsub.s32 0, %v218
    %v220 = vrot.slane %v182, %v219
    %v221 = vlaneseq
    %v222 = vshrl.u32 %v221, 7
    %v223 = vsub.s32 0, %v222
    %v224 = vrot.slane %v196, %v223
    %v225 = vlaneseq
    %v226 = vshrl.u32 %v225, 7
    %v227 = vsub.s32 0, %v226
    %v228 = vrot.slane %v198, %v227
    %v229 = vlaneseq
    %v230 = vshrl.u32 %v229, 7
    %v231 = vsub.s32 0, %v230
    %v232 = vrot.slane %v200, %v231
    %v242 = vcombine.high %v149, %v149
    %v244 = vunpack.c.l.s4 1966171168
    %v245 = vunpack.c.0.s8 %v244
    %v246 = vlaneseq
    %v247 = vshrl.u32 %v246, 7
    %v248 = vsub.s32 %v245, %v247
    %v249 = vrot.slane %v149, %v248
    %v251 = vunpack.c.l.s4 1966171168
    %v252 = vunpack.c.0.s8 %v251
    %v253 = vlaneseq
    %v254 = vshrl.u32 %v253, 7
    %v255 = vsub.s32 %v252, %v254
    %v256 = vrot.slane %v242, %v255
    %v257 = vcombine.high %v249, %v249
    %v258 = vcombine.high %v256, %v256
    %v260 = vunpack.c.l.s4 1966171168
    %v261 = vunpack.c.0.s8 %v260
    %v262 = vlaneseq
    %v263 = vshrl.u32 %v262, 7
    %v264 = vsub.s32 %v261, %v263
    %v265 = vrot.slane %v249, %v264
    %v267 = vunpack.c.l.s4 1966171168
    %v268 = vunpack.c.0.s8 %v267
    %v269 = vlaneseq
    %v270 = vshrl.u32 %v269, 7
    %v271 = vsub.s32 %v268, %v270
    %v272 = vrot.slane %v256, %v271
    %v274 = vunpack.c.l.s4 1966171168
    %v275 = vunpack.c.0.s8 %v274
    %v276 = vlaneseq
    %v277 = vshrl.u32 %v276, 7
    %v278 = vsub.s32 %v275, %v277
    %v279 = vrot.slane %v257, %v278
    %v281 = vunpack.c.l.s4 1966171168
    %v282 = vunpack.c.0.s8 %v281
    %v283 = vlaneseq
    %v284 = vshrl.u32 %v283, 7
    %v285 = vsub.s32 %v282, %v284
    %v286 = vrot.slane %v258, %v285
    %v287 = vcombine.high %v265, %v265
    %v288 = vcombine.high %v272, %v272
    %v289 = vcombine.high %v279, %v279
    %v290 = vcombine.high %v286, %v286
    %v291 = vlaneseq
    %v292 = vshrl.u32 %v291, 7
    %v293 = vsub.s32 0, %v292
    %v294 = vrot.slane %v265, %v293
    %v295 = vlaneseq
    %v296 = vshrl.u32 %v295, 7
    %v297 = vsub.s32 0, %v296
    %v298 = vrot.slane %v279, %v297
    %v299 = vlaneseq
    %v300 = vshrl.u32 %v299, 7
    %v301 = vsub.s32 0, %v300
    %v302 = vrot.slane %v287, %v301
    %v303 = vlaneseq
    %v304 = vshrl.u32 %v303, 7
    %v305 = vsub.s32 0, %v304
    %v306 = vrot.slane %v289, %v305
    %v307 = vlaneseq
    %v308 = vshrl.u32 %v307, 7
    %v309 = vsub.s32 0, %v308
    %v310 = vrot.slane %v272, %v309
    %v311 = vlaneseq
    %v312 = vshrl.u32 %v311, 7
    %v313 = vsub.s32 0, %v312
    %v314 = vrot.slane %v286, %v313
    %v315 = vlaneseq
    %v316 = vshrl.u32 %v315, 7
    %v317 = vsub.s32 0, %v316
    %v318 = vrot.slane %v288, %v317
    %v319 = vlaneseq
    %v320 = vshrl.u32 %v319, 7
    %v321 = vsub.s32 0, %v320
    %v322 = vrot.slane %v290, %v321
    %v333 = vmul.f32 %v204, %v147
    %v334 = vmul.f32 %v208, %v147
    %v335 = vmul.f32 %v212, %v147
    %v336 = vmul.f32 %v216, %v147
    %v337 = vmul.f32 %v220, %v152
    %v338 = vmul.f32 %v224, %v152
    %v339 = vmul.f32 %v228, %v152
    %v340 = vmul.f32 %v232, %v152
    %v341 = vmul.f32 %v294, %v149
    %v342 = vmul.f32 %v298, %v149
    %v343 = vmul.f32 %v302, %v149
    %v344 = vmul.f32 %v306, %v149
    %v345 = vmul.f32 %v310, %v242
    %v346 = vmul.f32 %v314, %v242
    %v347 = vmul.f32 %v318, %v242
    %v348 = vmul.f32 %v322, %v242
    %v349 = vadd.f32 %v333, %v341
    %v350 = vadd.f32 %v334, %v342
    %v351 = vadd.f32 %v335, %v343
    %v352 = vadd.f32 %v336, %v344
    %v353 = vadd.f32 %v337, %v345
    %v354 = vadd.f32 %v338, %v346
    %v355 = vadd.f32 %v339, %v347
    %v356 = vadd.f32 %v340, %v348
    %v357 = vmul.f32 %v294, %v147
    %v358 = vmul.f32 %v298, %v147
    %v359 = vmul.f32 %v302, %v147
    %v360 = vmul.f32 %v306, %v147
    %v361 = vmul.f32 %v310, %v152
    %v362 = vmul.f32 %v314, %v152
    %v363 = vmul.f32 %v318, %v152
    %v364 = vmul.f32 %v322, %v152
    %v365 = vmul.f32 %v204, %v149
    %v366 = vmul.f32 %v208, %v149
    %v367 = vmul.f32 %v212, %v149
    %v368 = vmul.f32 %v216, %v149
    %v369 = vmul.f32 %v220, %v242
    %v370 = vmul.f32 %v224, %v242
    %v371 = vmul.f32 %v228, %v242
    %v372 = vmul.f32 %v232, %v242
    %v373 = vsub.f32 %v357, %v365
    %v374 = vsub.f32 %v358, %v366
    %v375 = vsub.f32 %v359, %v367
    %v376 = vsub.f32 %v360, %v368
    %v377 = vsub.f32 %v361, %v369
    %v378 = vsub.f32 %v362, %v370
    %v379 = vsub.f32 %v363, %v371
    %v380 = vsub.f32 %v364, %v372
    %v381 = vld [vmem:[#allocation7] sm:$0xff]
    %v382 = vld [vmem:[#allocation7 + $0x8] sm:$0xff]
    %v383 = vld [vmem:[#allocation7 + $0x10] sm:$0xff]
    %v384 = vld [vmem:[#allocation7 + $0x18] sm:$0xff]
    %v385 = vld [vmem:[#allocation7 + $0x20] sm:$0xff]
    %v386 = vld [vmem:[#allocation7 + $0x28] sm:$0xff]
    %v387 = vld [vmem:[#allocation7 + $0x30] sm:$0xff]
    %v388 = vld [vmem:[#allocation7 + $0x38] sm:$0xff]
    %v389 = vld [vmem:[#allocation7 + $0x40] sm:$0xff]
    %v390 = vld [vmem:[#allocation7 + $0x48] sm:$0xff]
    %v391 = vld [vmem:[#allocation7 + $0x50] sm:$0xff]
    %v392 = vld [vmem:[#allocation7 + $0x58] sm:$0xff]
    %v393 = vld [vmem:[#allocation7 + $0x60] sm:$0xff]
    %v394 = vld [vmem:[#allocation7 + $0x68] sm:$0xff]
    %v395 = vld [vmem:[#allocation7 + $0x70] sm:$0xff]
    %v396 = vld [vmem:[#allocation7 + $0x78] sm:$0xff]
    %v397 = vld [vmem:[#allocation8] sm:$0xff]
    %v398 = vld [vmem:[#allocation8 + $0x8] sm:$0xff]
    %v399 = vld [vmem:[#allocation8 + $0x10] sm:$0xff]
    %v400 = vld [vmem:[#allocation8 + $0x18] sm:$0xff]
    %v401 = vld [vmem:[#allocation8 + $0x20] sm:$0xff]
    %v402 = vld [vmem:[#allocation8 + $0x28] sm:$0xff]
    %v403 = vld [vmem:[#allocation8 + $0x30] sm:$0xff]
    %v404 = vld [vmem:[#allocation8 + $0x38] sm:$0xff]
    %v405 = vld [vmem:[#allocation8 + $0x40] sm:$0xff]
    %v406 = vld [vmem:[#allocation8 + $0x48] sm:$0xff]
    %v407 = vld [vmem:[#allocation8 + $0x50] sm:$0xff]
    %v408 = vld [vmem:[#allocation8 + $0x58] sm:$0xff]
    %v409 = vld [vmem:[#allocation8 + $0x60] sm:$0xff]
    %v410 = vld [vmem:[#allocation8 + $0x68] sm:$0xff]
    %v411 = vld [vmem:[#allocation8 + $0x70] sm:$0xff]
    %v412 = vld [vmem:[#allocation8 + $0x78] sm:$0xff]
    %v421 = vcombine.low %v373, %v374
    %v422 = vcombine.low %v375, %v376
    %v423 = vcombine.low %v377, %v378
    %v424 = vcombine.low %v379, %v380
    %429 = vmatprep.subr.mxu0 0.0
    %430 = vmatpush1.msra.mxu0 %v397
    %431 = vmatprep.subr.mxu0 0.0
    %432 = vmatpush1.msra.mxu0 %v398
    %433 = vmatprep.subr.mxu0 0.0
    %434 = vmatpush1.msra.mxu0 %v399
    %435 = vmatprep.subr.mxu0 0.0
    %436 = vmatpush1.msra.mxu0 %v400
    %437 = vmatprep.subr.mxu0 0.0
    %438 = vmatpush1.msra.mxu0 %v401
    %439 = vmatprep.subr.mxu0 0.0
    %440 = vmatpush1.msra.mxu0 %v402
    %441 = vmatprep.subr.mxu0 0.0
    %442 = vmatpush1.msra.mxu0 %v403
    %443 = vmatprep.subr.mxu0 0.0
    %444 = vmatpush1.msra.mxu0 %v404
    %445 = vmatprep.subr.mxu0 0.0
    %446 = vmatpush1.msra.mxu0 %v405
    %447 = vmatprep.subr.mxu0 0.0
    %448 = vmatpush1.msra.mxu0 %v406
    %449 = vmatprep.subr.mxu0 0.0
    %450 = vmatpush1.msra.mxu0 %v407
    %451 = vmatprep.subr.mxu0 0.0
    %452 = vmatpush1.msra.mxu0 %v408
    %453 = vmatprep.subr.mxu0 0.0
    %454 = vmatpush1.msra.mxu0 %v409
    %455 = vmatprep.subr.mxu0 0.0
    %456 = vmatpush1.msra.mxu0 %v410
    %457 = vmatprep.subr.mxu0 0.0
    %458 = vmatpush1.msra.mxu0 %v411
    %459 = vmatprep.subr.mxu0 0.0
    %460 = vmatpush1.msra.mxu0 %v412
    %461 = vmatprep.subr.mxu0 0.0
    %462 = vmatpush1.msra.mxu0 0.0
    %463 = vmatprep.subr.mxu0 0.0
    %464 = vmatpush1.msra.mxu0 0.0
    %465 = vmatprep.subr.mxu0 0.0
    %466 = vmatpush1.msra.mxu0 0.0
    %467 = vmatprep.subr.mxu0 0.0
    %468 = vmatpush1.msra.mxu0 0.0
    %469 = vmatprep.subr.mxu0 0.0
    %470 = vmatpush1.msra.mxu0 0.0
    %471 = vmatprep.subr.mxu0 0.0
    %472 = vmatpush1.msra.mxu0 0.0
    %473 = vmatprep.subr.mxu0 0.0
    %474 = vmatpush1.msra.mxu0 0.0
    %475 = vmatprep.subr.mxu0 0.0
    %476 = vmatpush1.msra.mxu0 0.0
    %477 = vmatprep.subr.mxu0 0.0
    %478 = vmatpush1.msra.mxu0 0.0
    %479 = vmatprep.subr.mxu0 0.0
    %480 = vmatpush1.msra.mxu0 0.0
    %481 = vmatprep.subr.mxu0 0.0
    %482 = vmatpush1.msra.mxu0 0.0
    %483 = vmatprep.subr.mxu0 0.0
    %484 = vmatpush1.msra.mxu0 0.0
    %485 = vmatprep.subr.mxu0 0.0
    %486 = vmatpush1.msra.mxu0 0.0
    %487 = vmatprep.subr.mxu0 0.0
    %488 = vmatpush1.msra.mxu0 0.0
    %489 = vmatprep.subr.mxu0 0.0
    %490 = vmatpush1.msra.mxu0 0.0
    %491 = vmatprep.subr.mxu0 0.0
    %492 = vmatpush1.msra.mxu0 0.0
    %493 = vmatprep.mubr.f32.mxu0 0.0
    %494 = vmatmul.mubr.f32.gmra.mrb[0].mxu0 %v421
    %v495 = vpop.f32.mrb[0].mxu0
    %v496 = vadd.f32 0.0, %v495
    %v497 = vpop.f32.mrb[0].mxu0
    %498 = vmatprep.mubr.f32.mxu0 0.0
    %499 = vmatmul.mubr.f32.gmra.mrb[0].mxu0 %v422
    %v500 = vpop.f32.mrb[0].mxu0
    %v501 = vadd.f32 0.0, %v500
    %v502 = vpop.f32.mrb[0].mxu0
    %503 = vmatprep.mubr.f32.mxu0 0.0
    %504 = vmatmul.mubr.f32.gmra.mrb[0].mxu0 %v423
    %v505 = vpop.f32.mrb[0].mxu0
    %v506 = vadd.f32 0.0, %v505
    %v507 = vpop.f32.mrb[0].mxu0
    %508 = vmatprep.mubr.f32.mxu0 0.0
    %509 = vmatmul.mubr.f32.gmra.mrb[0].mxu0 %v424
    %v510 = vpop.f32.mrb[0].mxu0
    %v511 = vadd.f32 0.0, %v510
    %v512 = vpop.f32.mrb[0].mxu0
    %513 = vdwg.mxu0
    %v522 = vcombine.low %v349, %v350
    %v523 = vcombine.low %v351, %v352
    %v524 = vcombine.low %v353, %v354
    %v525 = vcombine.low %v355, %v356
    %530 = vmatprep.subr.mxu0 0.0
    %531 = vmatpush1.msra.mxu0 %v381
    %532 = vmatprep.subr.mxu0 0.0
    %533 = vmatpush1.msra.mxu0 %v382
    %534 = vmatprep.subr.mxu0 0.0
    %535 = vmatpush1.msra.mxu0 %v383
    %536 = vmatprep.subr.mxu0 0.0
    %537 = vmatpush1.msra.mxu0 %v384
    %538 = vmatprep.subr.mxu0 0.0
    %539 = vmatpush1.msra.mxu0 %v385
    %540 = vmatprep.subr.mxu0 0.0
    %541 = vmatpush1.msra.mxu0 %v386
    %542 = vmatprep.subr.mxu0 0.0
    %543 = vmatpush1.msra.mxu0 %v387
    %544 = vmatprep.subr.mxu0 0.0
    %545 = vmatpush1.msra.mxu0 %v388
    %546 = vmatprep.subr.mxu0 0.0
    %547 = vmatpush1.msra.mxu0 %v389
    %548 = vmatprep.subr.mxu0 0.0
    %549 = vmatpush1.msra.mxu0 %v390
    %550 = vmatprep.subr.mxu0 0.0
    %551 = vmatpush1.msra.mxu0 %v391
    %552 = vmatprep.subr.mxu0 0.0
    %553 = vmatpush1.msra.mxu0 %v392
    %554 = vmatprep.subr.mxu0 0.0
    %555 = vmatpush1.msra.mxu0 %v393
    %556 = vmatprep.subr.mxu0 0.0
    %557 = vmatpush1.msra.mxu0 %v394
    %558 = vmatprep.subr.mxu0 0.0
    %559 = vmatpush1.msra.mxu0 %v395
    %560 = vmatprep.subr.mxu0 0.0
    %561 = vmatpush1.msra.mxu0 %v396
    %562 = vmatprep.subr.mxu0 0.0
    %563 = vmatpush1.msra.mxu0 0.0
    %564 = vmatprep.subr.mxu0 0.0
    %565 = vmatpush1.msra.mxu0 0.0
    %566 = vmatprep.subr.mxu0 0.0
    %567 = vmatpush1.msra.mxu0 0.0
    %568 = vmatprep.subr.mxu0 0.0
    %569 = vmatpush1.msra.mxu0 0.0
    %570 = vmatprep.subr.mxu0 0.0
    %571 = vmatpush1.msra.mxu0 0.0
    %572 = vmatprep.subr.mxu0 0.0
    %573 = vmatpush1.msra.mxu0 0.0
    %574 = vmatprep.subr.mxu0 0.0
    %575 = vmatpush1.msra.mxu0 0.0
    %576 = vmatprep.subr.mxu0 0.0
    %577 = vmatpush1.msra.mxu0 0.0
    %578 = vmatprep.subr.mxu0 0.0
    %579 = vmatpush1.msra.mxu0 0.0
    %580 = vmatprep.subr.mxu0 0.0
    %581 = vmatpush1.msra.mxu0 0.0
    %582 = vmatprep.subr.mxu0 0.0
    %583 = vmatpush1.msra.mxu0 0.0
    %584 = vmatprep.subr.mxu0 0.0
    %585 = vmatpush1.msra.mxu0 0.0
    %586 = vmatprep.subr.mxu0 0.0
    %587 = vmatpush1.msra.mxu0 0.0
    %588 = vmatprep.subr.mxu0 0.0
    %589 = vmatpush1.msra.mxu0 0.0
    %590 = vmatprep.subr.mxu0 0.0
    %591 = vmatpush1.msra.mxu0 0.0
    %592 = vmatprep.subr.mxu0 0.0
    %593 = vmatpush1.msra.mxu0 0.0
    %594 = vmatprep.mubr.f32.mxu0 0.0
    %595 = vmatmul.mubr.f32.gmra.mrb[0].mxu0 %v522
    %v596 = vpop.f32.mrb[0].mxu0
    %v597 = vadd.f32 %v496, %v596
    %v598 = vpop.f32.mrb[0].mxu0
    %599 = vmatprep.mubr.f32.mxu0 0.0
    %600 = vmatmul.mubr.f32.gmra.mrb[0].mxu0 %v523
    %v601 = vpop.f32.mrb[0].mxu0
    %v602 = vadd.f32 %v501, %v601
    %v603 = vpop.f32.mrb[0].mxu0
    %604 = vmatprep.mubr.f32.mxu0 0.0
    %605 = vmatmul.mubr.f32.gmra.mrb[0].mxu0 %v524
    %v606 = vpop.f32.mrb[0].mxu0
    %v607 = vadd.f32 %v506, %v606
    %v608 = vpop.f32.mrb[0].mxu0
    %609 = vmatprep.mubr.f32.mxu0 0.0
    %610 = vmatmul.mubr.f32.gmra.mrb[0].mxu0 %v525
    %v611 = vpop.f32.mrb[0].mxu0
    %v612 = vadd.f32 %v511, %v611
    %v613 = vpop.f32.mrb[0].mxu0
    %614 = vdwg.mxu0
    %615 = vst [vmem:[#allocation10] sm:$0xff] %v597
    %616 = vst [vmem:[#allocation10 + $0x8] sm:$0xff] %v602
    %617 = vst [vmem:[#allocation10 + $0x10] sm:$0xff] %v607
    %618 = vst [vmem:[#allocation10 + $0x18] sm:$0xff] %v612
    // Predicated region
    $region34: #{tpu_custom_call.1} parent=1 // pred_check
      _
    $region35: #{tpu_custom_call.1} parent=1 // pred_check_branch
      %620 = sbr.rel (0) target = $region37
    $region36: #{tpu_custom_call.1} parent=1 // pred_region
      %s622 = ssub.s32 512, 512
      %623 = vsyncadd [#allocation4], %s622
      %s624 = sshll.u32 [#allocation10], 4
      %s625 = int_to_ptr.vmem [resolvable:$true] %s624
      %630 = dma.vmem_to_hbm [thread:$0]  %s625, 512, %s4, [#allocation4], 128, 128, 8
    $region37: #{tpu_custom_call.1} parent=1 // pred_fallthru
      _
    // Predicated region
    $region38: #{tpu_custom_call.1} parent=1 // pred_check
      _
    $region39: #{tpu_custom_call.1} parent=1 // pred_check_branch
      %632 = sbr.rel (0) target = $region41
    $region40: #{tpu_custom_call.1} parent=1 // pred_region
      %633 = dma.done [#allocation4], 512
    $region41: #{tpu_custom_call.1} parent=1 // pred_fallthru
      _
    %634 = vsyncpa [#allocation3], 1
    %635 = vsyncpa [#allocation6], 1
    %636 = vsyncpa [#allocation9], 1
    %637 = vsyncpa [#allocation4], 1

</llo_original>
